<compile_context>
chip_gen: v5e
topology: v5e:2x2
jax: 0.10.0
libtpu: 0.0.40
codegen_flags: <defaults>
</compile_context>

<pallas_src>
import jax
import jax.numpy as jnp
from jax.experimental import pallas as pl
from jax.experimental.pallas import tpu as pltpu

LANE = 128       # lane width (last-dim tiling unit)
SUBLANE = 8      # sublane width (second-to-last-dim tiling unit)
MAX_TK = 4096    # max vocab (contraction) tile width


def _cdiv(a, b):
    return (a + b - 1) // b


def _round_up(x, m):
    return _cdiv(x, m) * m


def _vmem_capacity_bytes():
    try:
        return int(getattr(pltpu.get_tpu_info(), "vmem_capacity_bytes", 64 << 20))
    except Exception:
        return 64 << 20


def _vocab_tiling(vocab_size):
    """Padding-aware contraction tiling: balanced tiles, <128 wasted columns."""
    nk = _cdiv(vocab_size, MAX_TK)
    tk = _round_up(_cdiv(vocab_size, nk), LANE)
    return tk, nk, nk * tk


def _make_kernel(tk, vocab_size, weight_resident):
    ragged_k = (vocab_size % tk) != 0

    def kernel(x_ref, wT_ref, b_ref, o_ref):
        k = pl.program_id(1)

        @pl.when(k == 0)
        def _():
            o_ref[...] = jnp.zeros_like(o_ref)

        x = x_ref[...]
        if ragged_k:
            # The last vocab tile's DMA is clamped to the real array; lanes past
            # the true vocab hold undefined data (possibly NaN/Inf).  Zero them
            # so garbage * zero-padded-weight cannot poison the accumulator.
            col = k * tk + jax.lax.broadcasted_iota(jnp.int32, x.shape, 1)
            x = jnp.where(col < vocab_size, x, jnp.zeros_like(x))

        if weight_resident:
            w = wT_ref[pl.ds(pl.multiple_of(k * tk, tk), tk), :]
        else:
            w = wT_ref[...]

        # bf16 MXU matmul, f32 accumulation directly into the resident output.
        o_ref[...] += jnp.dot(x, w, preferred_element_type=jnp.float32)

        @pl.when(k == pl.num_programs(1) - 1)
        def _():
            # Bias already carries -1e30 in padded label lanes, so they vanish
            # from the max / logsumexp without any extra masking here.
            logits = o_ref[...] + b_ref[...]
            m = jnp.max(logits, axis=-1, keepdims=True)
            shifted = logits - m
            lse = jnp.log(jnp.sum(jnp.exp(shifted), axis=-1, keepdims=True))
            o_ref[...] = shifted - lse

    return kernel


def prepare_params(weight, bias):
    """One-time repack: PyTorch [L, V] weight -> bf16 [Vp, Lp], masked f32 bias."""
    L, V = weight.shape
    Lp = _round_up(L, LANE)
    _, _, Vp = _vocab_tiling(V)
    wT = (jnp.zeros((Vp, Lp), jnp.bfloat16)
          .at[:V, :L].set(weight.T.astype(jnp.bfloat16)))
    # Bake the label-pad mask into the bias: large finite negative (not -inf,
    # avoids inf-inf NaN edge cases in the max/subtract path).
    b = (jnp.full((1, Lp), -1e30, jnp.float32)
         .at[0, :L].set(bias.astype(jnp.float32)))
    return wT, b


def bow_classifier(bow_vec, wT_pad, b_pad, num_labels):
    """Forward pass: log_softmax(bow_vec @ W^T + b, axis=1) -> [B, num_labels] f32."""
    B, V = bow_vec.shape
    Vp, Lp = wT_pad.shape
    tk, nk, vp_expected = _vocab_tiling(V)
    assert Vp == vp_expected, "params were prepared for a different vocab size"
    assert b_pad.shape == (1, Lp)

    vmem_cap = _vmem_capacity_bytes()
    small_vmem = vmem_cap < (100 << 20)      # v7x-class 64 MiB vs v5e/v6e 128 MiB
    max_tb = 1024 if small_vmem else 2048

    nb = _cdiv(B, max_tb)
    if small_vmem and nb == 1 and B > SUBLANE:
        nb = 2                               # >=2 batch tiles -> both v7x TensorCores
    tb = _round_up(_cdiv(B, nb), SUBLANE)
    nb = _cdiv(B, tb)
    Bp = nb * tb

    # bf16 activation stream (callers that already hold bf16 skip this cast).
    x = bow_vec if bow_vec.dtype == jnp.bfloat16 else bow_vec.astype(jnp.bfloat16)

    # Only toy shapes (a whole dimension smaller than one tile) get padded;
    # realistic shapes stream unpadded: the ragged vocab tail is masked
    # in-kernel, ragged batch rows produce garbage that is sliced off below.
    pad_rows = tb - B if B < tb else 0
    pad_cols = tk - V if V < tk else 0
    if pad_rows or pad_cols:
        x = jnp.pad(x, ((0, pad_rows), (0, pad_cols)))

    # Keep the packed weight fully VMEM-resident when it comfortably fits,
    # eliminating its re-stream once per batch tile.
    w_resident_bytes = 2 * Vp * Lp * 2       # worst case: double-buffered bf16
    weight_resident = w_resident_bytes <= vmem_cap // 4
    if weight_resident:
        w_spec = pl.BlockSpec((Vp, Lp), lambda i, k: (0, 0))
        w_bytes = w_resident_bytes
    else:
        w_spec = pl.BlockSpec((tk, Lp), lambda i, k: (k, 0))
        w_bytes = 2 * tk * Lp * 2

    vmem_bytes = (2 * tb * tk * 2     # double-buffered bf16 x tiles
                  + w_bytes           # weight (resident or double-buffered tile)
                  + 2 * tb * Lp * 4   # resident f32 output block (+ buffer)
                  + (4 << 20))        # bias + compiler scratch headroom
    vmem_limit = int(min(max(vmem_bytes, 32 << 20), (3 * vmem_cap) // 4))

    out = pl.pallas_call(
        _make_kernel(tk, V, weight_resident),
        out_shape=jax.ShapeDtypeStruct((Bp, Lp), jnp.float32),
        grid_spec=pltpu.PrefetchScalarGridSpec(
            num_scalar_prefetch=0,
            grid=(nb, nk),
            in_specs=[
                pl.BlockSpec((tb, tk), lambda i, k: (i, k)),   # x tile
                w_spec,                                        # W^T (resident or tiled)
                pl.BlockSpec((1, Lp), lambda i, k: (0, 0)),    # masked bias (resident)
            ],
            out_specs=pl.BlockSpec((tb, Lp), lambda i, k: (i, 0)),
        ),
        compiler_params=pltpu.CompilerParams(
            dimension_semantics=("parallel", "arbitrary"),
            vmem_limit_bytes=vmem_limit,
        ),
    )(x, wT_pad, b_pad)

    return out[:B, :num_labels]


if __name__ == "__main__":
    # Small shapes consistent with the module: bag-of-words vectors.
    batch = 4
    vocab_size = 32
    num_labels = 8

    key = jax.random.PRNGKey(0)
    k_x, k_w, k_b = jax.random.split(key, 3)

    # Deterministic parameter init (PyTorch nn.Linear-style uniform bound).
    bound = 1.0 / (vocab_size ** 0.5)
    weight = jax.random.uniform(
        k_w, (num_labels, vocab_size), jnp.float32, -bound, bound
    )
    bias = jax.random.uniform(k_b, (num_labels,), jnp.float32, -bound, bound)

    # Non-negative bag-of-words counts as input.
    bow_vec = jax.random.uniform(k_x, (batch, vocab_size), jnp.float32, 0.0, 3.0)

    # Parameter repack happens once, outside the per-call hot path.
    wT_pad, b_pad = prepare_params(weight, bias)

    out = bow_classifier(bow_vec, wT_pad, b_pad, num_labels)
    out = jax.block_until_ready(out)

    # Reference built from the same bf16-rounded operands (kernel accumulates
    # in f32), so the comparison isolates kernel correctness from quantization.
    xb = bow_vec.astype(jnp.bfloat16).astype(jnp.float32)
    wb = weight.astype(jnp.bfloat16).astype(jnp.float32)
    ref = jax.nn.log_softmax(xb @ wb.T + bias, axis=1)

    assert out.shape == (batch, num_labels)
    assert jnp.allclose(out, ref, atol=2e-3, rtol=2e-3), "mismatch vs reference"
    # log-probabilities should sum (in prob space) to 1 per row
    assert jnp.allclose(jnp.sum(jnp.exp(out), axis=1), 1.0, atol=1e-3)

    print("KERNEL_OK")
</pallas_src>

<mosaic_0001>
module attributes {stable_mosaic.version = 11 : i64} {
  func.func @kernel(%arg0: i32, %arg1: i32, %arg2: memref<8x128xbf16, #tpu.memory_space<vmem>>, %arg3: memref<128x128xbf16, #tpu.memory_space<vmem>>, %arg4: memref<1x128xf32, #tpu.memory_space<vmem>>, %arg5: memref<8x128xf32, #tpu.memory_space<vmem>>) attributes {dimension_semantics = [#tpu.dimension_semantics<parallel>, #tpu.dimension_semantics<arbitrary>], iteration_bounds = array<i64: 1, 1>, scalar_prefetch = 0 : i64, scratch_operands = 0 : i64, tpu.core_type = #tpu.core_type<tc>, window_params = [{transform_indices = @transform_0, window_bounds = array<i64: 8, 128>}, {pipeline_mode = #tpu.pipeline_mode<synchronous>, transform_indices = @transform_1, window_bounds = array<i64: 128, 128>}, {pipeline_mode = #tpu.pipeline_mode<synchronous>, transform_indices = @transform_2, window_bounds = array<i64: 1, 128>}, {transform_indices = @transform_3, window_bounds = array<i64: 8, 128>}]} {
    %c0_i32 = arith.constant 0 : i32
    %0 = arith.cmpi eq, %arg1, %c0_i32 : i32
    %1 = arith.extui %0 : i1 to i32
    %c0_i32_0 = arith.constant 0 : i32
    %2 = arith.cmpi ne, %1, %c0_i32_0 : i32
    scf.if %2 {
      %cst_11 = arith.constant 0.000000e+00 : f32
      %23 = vector.broadcast %cst_11 : f32 to vector<8x128xf32>
      %c0_12 = arith.constant 0 : index
      %c0_13 = arith.constant 0 : index
      %24 = vector.load %arg5[%c0_12, %c0_13] : memref<8x128xf32, #tpu.memory_space<vmem>>, vector<8x128xf32>
      tpu.vector_store %arg5[%c0_12, %c0_13], %23 {strides = array<i32>} : memref<8x128xf32, #tpu.memory_space<vmem>>, vector<8x128xf32>,
    } else {
    }
    %c0 = arith.constant 0 : index
    %c0_1 = arith.constant 0 : index
    %3 = vector.load %arg2[%c0, %c0_1] : memref<8x128xbf16, #tpu.memory_space<vmem>>, vector<8x128xbf16>
    %c128_i32 = arith.constant 128 : i32
    %4 = arith.muli %arg1, %c128_i32 : i32
    %5 = tpu.iota {dimensions = array<i32: 1>} : vector<8x128xi32>
    %6 = vector.broadcast %4 : i32 to vector<8x128xi32>
    %7 = arith.addi %6, %5 : vector<8x128xi32>
    %c32_i32 = arith.constant 32 : i32
    %8 = vector.broadcast %c32_i32 : i32 to vector<8x128xi32>
    %9 = arith.cmpi slt, %7, %8 : vector<8x128xi32>
    %cst = arith.constant 0.000000e+00 : bf16
    %10 = vector.broadcast %cst : bf16 to vector<8x128xbf16>
    %11 = arith.select %9, %3, %10 : vector<8x128xi1>, vector<8x128xbf16>
    %c128_i32_2 = arith.constant 128 : i32
    %12 = arith.muli %arg1, %c128_i32_2 : i32
    %13 = tpu.assume_multiple %12, 128 : i32
    %14 = arith.index_cast %13 : i32 to index
    %c0_3 = arith.constant 0 : index
    %15 = vector.load %arg3[%14, %c0_3] : memref<128x128xbf16, #tpu.memory_space<vmem>>, vector<128x128xbf16>
    %c0_4 = arith.constant 0 : index
    %c0_5 = arith.constant 0 : index
    %16 = vector.load %arg5[%c0_4, %c0_5] : memref<8x128xf32, #tpu.memory_space<vmem>>, vector<8x128xf32>
    %cst_6 = arith.constant dense<0.000000e+00> : vector<8x128xf32>
    %17 = tpu.matmul %11, %15, %cst_6 {dimension_numbers = #tpu.dot_dimension_numbers<[1], [0], [0], [1], [0, 0, 1, 1], [], []>} : vector<8x128xbf16>, vector<128x128xbf16>, vector<8x128xf32> -> vector<8x128xf32>
    %18 = arith.addf %16, %17 : vector<8x128xf32>
    %c0_7 = arith.constant 0 : index
    %c0_8 = arith.constant 0 : index
    %19 = vector.load %arg5[%c0_7, %c0_8] : memref<8x128xf32, #tpu.memory_space<vmem>>, vector<8x128xf32>
    tpu.vector_store %arg5[%c0_7, %c0_8], %18 {strides = array<i32>} : memref<8x128xf32, #tpu.memory_space<vmem>>, vector<8x128xf32>,
    %c0_i32_9 = arith.constant 0 : i32
    %20 = arith.cmpi eq, %arg1, %c0_i32_9 : i32
    %21 = arith.extui %20 : i1 to i32
    %c0_i32_10 = arith.constant 0 : i32
    %22 = arith.cmpi ne, %21, %c0_i32_10 : i32
    scf.if %22 {
      %c0_11 = arith.constant 0 : index
      %c0_12 = arith.constant 0 : index
      %23 = vector.load %arg5[%c0_11, %c0_12] : memref<8x128xf32, #tpu.memory_space<vmem>>, vector<8x128xf32>
      %c0_13 = arith.constant 0 : index
      %c0_14 = arith.constant 0 : index
      %24 = vector.load %arg4[%c0_13, %c0_14] : memref<1x128xf32, #tpu.memory_space<vmem>>, vector<1x128xf32>
      %25 = vector.broadcast %24 : vector<1x128xf32> to vector<8x128xf32>
      %26 = arith.addf %23, %25 : vector<8x128xf32>
      %cst_15 = arith.constant dense<0xFF800000> : vector<8xf32>
      %27 = vector.multi_reduction <maximumf>, %26, %cst_15 [1] : vector<8x128xf32> to vector<8xf32>
      %28 = vector.shape_cast %27 : vector<8xf32> to vector<8x1xf32>
      %29 = vector.broadcast %28 : vector<8x1xf32> to vector<8x128xf32>
      %30 = arith.subf %26, %29 : vector<8x128xf32>
      %31 = math.exp %30 : vector<8x128xf32>
      %cst_16 = arith.constant dense<0.000000e+00> : vector<8xf32>
      %32 = vector.multi_reduction <add>, %31, %cst_16 [1] : vector<8x128xf32> to vector<8xf32>
      %33 = vector.shape_cast %32 : vector<8xf32> to vector<8x1xf32>
      %34 = math.log %33 : vector<8x1xf32>
      %35 = vector.broadcast %34 : vector<8x1xf32> to vector<8x128xf32>
      %36 = arith.subf %30, %35 : vector<8x128xf32>
      %c0_17 = arith.constant 0 : index
      %c0_18 = arith.constant 0 : index
      %37 = vector.load %arg5[%c0_17, %c0_18] : memref<8x128xf32, #tpu.memory_space<vmem>>, vector<8x128xf32>
      tpu.vector_store %arg5[%c0_17, %c0_18], %36 {strides = array<i32>} : memref<8x128xf32, #tpu.memory_space<vmem>>, vector<8x128xf32>,
    } else {
    }
    return
  }
  func.func @transform_0(%arg0: i32, %arg1: i32) -> (i32, i32) {
    %c0_i32 = arith.constant 0 : i32
    return %arg0, %arg1 : i32, i32
  }
  func.func @transform_1(%arg0: i32, %arg1: i32) -> (i32, i32) {
    %c0_i32 = arith.constant 0 : i32
    %c0_i32_0 = arith.constant 0 : i32
    %c0_i32_1 = arith.constant 0 : i32
    return %c0_i32, %c0_i32_0 : i32, i32
  }
  func.func @transform_2(%arg0: i32, %arg1: i32) -> (i32, i32) {
    %c0_i32 = arith.constant 0 : i32
    %c0_i32_0 = arith.constant 0 : i32
    %c0_i32_1 = arith.constant 0 : i32
    return %c0_i32, %c0_i32_0 : i32, i32
  }
  func.func @transform_3(%arg0: i32, %arg1: i32) -> (i32, i32) {
    %c0_i32 = arith.constant 0 : i32
    %c0_i32_0 = arith.constant 0 : i32
    return %arg0, %c0_i32 : i32, i32
  }
}

</mosaic_0001>

<llo_original>
// kernel: tpu_custom_call.1
$region0: #{tpu_custom_call.1}
  #allocation0 [shape = 'u32[]', space=smem, size = 0x4, offset = 0x4, fixed_abs, tag = 'smem constant byte address 0x4 - core index']
  #allocation1 [shape = 'u32[72,128]{1,0:T(1,128)}', space=vmem, size = 0x9000, scoped, tag = 'internal scratch']
  %s0 = inlined_call_operand.hbm [shape: bf16[8,128], index: 0, kind: input, shape index: {}]
  %s1 = inlined_call_operand.hbm [shape: bf16[128,128], index: 1, kind: input, shape index: {}]
  %s2 = inlined_call_operand.vmem [shape: f32[1,128], index: 2, kind: input, shape index: {}]
  %s3 = inlined_call_operand.hbm [shape: f32[8,128], index: 3, kind: output, shape index: {}]
  %s4 = sld [smem:[#allocation0]]
  $region38: #{tpu_custom_call.1} parent=0
    _
  %s6 = ssub.s32 1, %s4
  %s7 = scalar_select 0, %s6, %s4
  $region1: #{tpu_custom_call.1} parent=0
    #allocation2 [shape = 'u8[2048]{0}', space=vmem, size = 0x800, scoped, tag = 'input window, operand 0, single buffered']
    #allocation3 [shape = 's32[1]{0}', space=sflag, size = 0x4, scoped, tag = 'scoped memory for tpu_custom_call.1']
    #allocation4 [shape = 's32[1]{0}', space=sflag, size = 0x4, scoped, tag = 'scoped memory for tpu_custom_call.1']
    #allocation5 [shape = 'u8[32768]{0}', space=vmem, size = 0x8000, scoped, tag = 'input window, operand 1, single buffered']
    #allocation6 [shape = 's32[1]{0}', space=sflag, size = 0x4, scoped, tag = 'scoped memory for tpu_custom_call.1']
    #allocation7 [shape = 'u8[4096]{0}', space=vmem, size = 0x1000, scoped, tag = 'output window, operand 0, single buffered']
    %8 = vsyncpa [#allocation3], 0
    %9 = vsyncpa [#allocation6], 0
    %10 = vsyncpa [#allocation4], 0
    // Predicated region
    $region2: #{tpu_custom_call.1} parent=1 // pred_check
      _
    $region3: #{tpu_custom_call.1} parent=1 // pred_check_branch
      %12 = sbr.rel (0) target = $region5
    $region4: #{tpu_custom_call.1} parent=1 // pred_region
      %14 = vsyncadd [#allocation3], 0
      %s16 = sshll.u32 %s0, 4
      %s17 = int_to_ptr.hbm [resolvable:$true] %s16
      %s18 = sshll.u32 [#allocation2], 4
      %s19 = int_to_ptr.vmem [resolvable:$true] %s18
      %21 = dma.hbm_to_vmem [thread:$0]  %s17, 64, %s19, [#allocation3]
    $region5: #{tpu_custom_call.1} parent=1 // pred_fallthru
      _
    // Predicated region
    $region6: #{tpu_custom_call.1} parent=1 // pred_check
      _
    $region7: #{tpu_custom_call.1} parent=1 // pred_check_branch
      %23 = sbr.rel (0) target = $region9
    $region8: #{tpu_custom_call.1} parent=1 // pred_region
      %25 = vsyncadd [#allocation6], 0
      %s26 = sshll.u32 %s1, 4
      %s27 = int_to_ptr.hbm [resolvable:$true] %s26
      %s28 = sshll.u32 [#allocation5], 4
      %s29 = int_to_ptr.vmem [resolvable:$true] %s28
      %34 = dma.hbm_to_vmem [thread:$0]  %s27, 1024, %s29, [#allocation6], 64, 64, 4
    $region9: #{tpu_custom_call.1} parent=1 // pred_fallthru
      _
    // Predicated region
    $region10: #{tpu_custom_call.1} parent=1 // pred_check
      _
    $region11: #{tpu_custom_call.1} parent=1 // pred_check_branch
      %36 = sbr.rel (0) target = $region13
    $region12: #{tpu_custom_call.1} parent=1 // pred_region
      _
    $region13: #{tpu_custom_call.1} parent=1 // pred_fallthru
      _
    // Predicated region
    $region14: #{tpu_custom_call.1} parent=1 // pred_check
      _
    $region15: #{tpu_custom_call.1} parent=1 // pred_check_branch
      %38 = sbr.rel (0) target = $region17
    $region16: #{tpu_custom_call.1} parent=1 // pred_region
      %40 = dma.done [#allocation3], 64
    $region17: #{tpu_custom_call.1} parent=1 // pred_fallthru
      _
    // Predicated region
    $region18: #{tpu_custom_call.1} parent=1 // pred_check
      _
    $region19: #{tpu_custom_call.1} parent=1 // pred_check_branch
      %42 = sbr.rel (0) target = $region21
    $region20: #{tpu_custom_call.1} parent=1 // pred_region
      %44 = dma.done [#allocation6], 1024
    $region21: #{tpu_custom_call.1} parent=1 // pred_fallthru
      _
    %p46 = scmp.eq.s32.totalorder 0, 0
    // Predicated region
    $region22: #{tpu_custom_call.1} parent=1 // pred_check
      %p47 = pneg %p46
    $region23: #{tpu_custom_call.1} parent=1 // pred_check_branch
      %49 = sbr.rel (%p47) target = $region25
    $region24: #{tpu_custom_call.1} parent=1 // pred_region
      %50 = vst [vmem:[#allocation7] sm:$0xff] 0.0
    $region25: #{tpu_custom_call.1} parent=1 // pred_fallthru
      _
    %v51 = vld [vmem:[#allocation2] sm:$0xf]
    %s52 = smul.u32 0, 128
    %v53 = vlaneseq
    %v54 = vand.u32 %v53, 127
    %v55 = vstv %s52
    %v56 = vadd.s32 %v55, %v54
    %vm57 = vcmp.lt.s32.totalorder %v56, 32
    %vm58 = vmpackc.low %vm57, %vm57
    %v59 = vsel %vm58, %v51, 0
    %s60 = sshra.s32 %s52, 3
    %s61 = sand.u32 %s52, 7
    %s62 = smul.addr %s60, 4
    %s63 = scalar_lea.vmem [#allocation5], %s62
    %v64 = vld [vmem:[%s63] sm:$0xf]
    %v65 = vld [vmem:[%s63 + $0x4] sm:$0xf]
    %v66 = vld [vmem:[%s63 + $0x8] sm:$0xf]
    %v67 = vld [vmem:[%s63 + $0xc] sm:$0xf]
    %v68 = vld [vmem:[%s63 + $0x10] sm:$0xf]
    %v69 = vld [vmem:[%s63 + $0x14] sm:$0xf]
    %v70 = vld [vmem:[%s63 + $0x18] sm:$0xf]
    %v71 = vld [vmem:[%s63 + $0x1c] sm:$0xf]
    %v72 = vld [vmem:[%s63 + $0x20] sm:$0xf]
    %v73 = vld [vmem:[%s63 + $0x24] sm:$0xf]
    %v74 = vld [vmem:[%s63 + $0x28] sm:$0xf]
    %v75 = vld [vmem:[%s63 + $0x2c] sm:$0xf]
    %v76 = vld [vmem:[%s63 + $0x30] sm:$0xf]
    %v77 = vld [vmem:[%s63 + $0x34] sm:$0xf]
    %v78 = vld [vmem:[%s63 + $0x38] sm:$0xf]
    %v79 = vld [vmem:[%s63 + $0x3c] sm:$0xf]
    %v80 = vld [vmem:[#allocation7] sm:$0xff]
    %v97 = vunpack.c.l.b16 %v64
    %v98 = vunpack.c.l.b16 %v65
    %v99 = vunpack.c.l.b16 %v66
    %v100 = vunpack.c.l.b16 %v67
    %v101 = vunpack.c.l.b16 %v68
    %v102 = vunpack.c.l.b16 %v69
    %v103 = vunpack.c.l.b16 %v70
    %v104 = vunpack.c.l.b16 %v71
    %v105 = vunpack.c.l.b16 %v72
    %v106 = vunpack.c.l.b16 %v73
    %v107 = vunpack.c.l.b16 %v74
    %v108 = vunpack.c.l.b16 %v75
    %v109 = vunpack.c.l.b16 %v76
    %v110 = vunpack.c.l.b16 %v77
    %v111 = vunpack.c.l.b16 %v78
    %v112 = vunpack.c.l.b16 %v79
    %v113 = vpack.c.b16 %v98, %v97
    %v114 = vpack.c.b16 %v100, %v99
    %v115 = vpack.c.b16 %v102, %v101
    %v116 = vpack.c.b16 %v104, %v103
    %v117 = vpack.c.b16 %v106, %v105
    %v118 = vpack.c.b16 %v108, %v107
    %v119 = vpack.c.b16 %v110, %v109
    %v120 = vpack.c.b16 %v112, %v111
    %129 = vmatpush.bf16.msra.mxu0 %v120
    %130 = vmatpush.bf16.msra.mxu0 %v119
    %131 = vmatpush.bf16.msra.mxu0 %v118
    %132 = vmatpush.bf16.msra.mxu0 %v117
    %133 = vmatpush.bf16.msra.mxu0 %v116
    %134 = vmatpush.bf16.msra.mxu0 %v115
    %135 = vmatpush.bf16.msra.mxu0 %v114
    %136 = vmatpush.bf16.msra.mxu0 %v113
    %137 = vmatmul.bf16.gmra.mxu0 %v59
    %v138 = vpop.f32.mrf.mxu0
    %v139 = vadd.f32 0.0, %v138
    %v140 = vpop.f32.mrf.mxu0
    %141 = vdwg.mxu0
    %v142 = vadd.f32 %v80, %v139
    %143 = vst [vmem:[#allocation7] sm:$0xff] %v142
    // Predicated region
    $region26: #{tpu_custom_call.1} parent=1 // pred_check
      %p144 = pneg %p46
    $region27: #{tpu_custom_call.1} parent=1 // pred_check_branch
      %146 = sbr.rel (%p144) target = $region29
    $region28: #{tpu_custom_call.1} parent=1 // pred_region
      %v147 = vld [vmem:[#allocation7] sm:$0xff]
      %v148 = vld [vmem:[%s2] sm:$0x1]
      %v150 = vperm.slane %v148, 0
      %v152 = vadd.f32 %v147, %v150
      %153 = vmax.xlane.f32.xlu0 %v152
      %v154 = vpop.xlane.xlu0 %153
      %v155 = vsub.f32 %v152, %v154
      %v156 = vmul.f32 %v155, 1.442695
      %v157 = vpow.pop %v156
      %158 = vadd.xlane.f32.xlu0 %v157
      %v159 = vpop.xlane.xlu0 %158
      %v160 = vlog2.pop %v159
      %v161 = vmul.f32 %v160, 0.6931472
      %v162 = vsub.f32 %v155, %v161
      %163 = vst [vmem:[#allocation7] sm:$0xff] %v162
    $region29: #{tpu_custom_call.1} parent=1 // pred_fallthru
      _
    // Predicated region
    $region30: #{tpu_custom_call.1} parent=1 // pred_check
      _
    $region31: #{tpu_custom_call.1} parent=1 // pred_check_branch
      %165 = sbr.rel (0) target = $region33
    $region32: #{tpu_custom_call.1} parent=1 // pred_region
      %167 = vsyncadd [#allocation4], 0
      %s169 = sshll.u32 [#allocation7], 4
      %s170 = int_to_ptr.vmem [resolvable:$true] %s169
      %s171 = sshll.u32 %s3, 4
      %s172 = int_to_ptr.hbm [resolvable:$true] %s171
      %174 = dma.vmem_to_hbm [thread:$0]  %s170, 128, %s172, [#allocation4]
    $region33: #{tpu_custom_call.1} parent=1 // pred_fallthru
      _
    // Predicated region
    $region34: #{tpu_custom_call.1} parent=1 // pred_check
      _
    $region35: #{tpu_custom_call.1} parent=1 // pred_check_branch
      %176 = sbr.rel (0) target = $region37
    $region36: #{tpu_custom_call.1} parent=1 // pred_region
      %178 = dma.done [#allocation4], 128
    $region37: #{tpu_custom_call.1} parent=1 // pred_fallthru
      _
    %179 = vsyncpa [#allocation3], 1
    %180 = vsyncpa [#allocation6], 1
    %181 = vsyncpa [#allocation4], 1

</llo_original>
